<compile_context>
chip_gen: v7x
topology: tpu7x:2x2x1
jax: 0.10.0
libtpu: 0.0.40
codegen_flags: <defaults>
</compile_context>

<pallas_src>
import jax
import jax.numpy as jnp
from jax.experimental import pallas as pl
from jax.experimental.pallas import tpu as pltpu


def _embed_kernel(tok_ids_smem,   # (B*S,) int32    SMEM (scalar prefetch)
                  seg_ids_ref,    # (1, TILE_S, 1) int32  VMEM tile
                  tok_tbl_hbm,    # (V, H)          HBM (pl.ANY), gathered via DMA
                  pos_tile_ref,   # (TILE_S, H)     VMEM tile (auto-pipelined)
                  seg_tbl_ref,    # (3, H)          VMEM (resident)
                  o_ref,          # (1, TILE_S, H)  VMEM output tile
                  gather_buf,     # (TILE_S, H)     VMEM scratch for gathered rows
                  copy_sems):     # (TILE_S,)       DMA semaphores
    tile_s = o_ref.shape[1]
    seq_len = tile_s * pl.num_programs(0)
    s_idx = pl.program_id(0)
    b_idx = pl.program_id(1)
    base = b_idx * seq_len + s_idx * tile_s

    # --- token embedding: per-row DMA gather from the HBM vocab table ---------
    copies = []
    for i in range(tile_s):
        tid = tok_ids_smem[base + i]
        cp = pltpu.make_async_copy(
            tok_tbl_hbm.at[pl.ds(tid, 1), :],
            gather_buf.at[pl.ds(i, 1), :],
            copy_sems.at[i])
        cp.start()
        copies.append(cp)

    # --- segment embedding: 3-way select on the VPU (overlaps the gather DMAs)
    seg_ids = seg_ids_ref[0]                                   # (TILE_S, 1) int32
    seg_emb = jnp.where(
        seg_ids == 0, seg_tbl_ref[0:1, :],
        jnp.where(seg_ids == 1, seg_tbl_ref[1:2, :], seg_tbl_ref[2:3, :]))

    for cp in copies:
        cp.wait()

    # --- combine: gathered token rows + positional tile + segment rows --------
    o_ref[0] = (gather_buf[...] + pos_tile_ref[...] + seg_emb).astype(o_ref.dtype)


def _pick_tile_s(seq_len: int) -> int:
    """Largest multiple-of-8 tile dividing S, capped so the unrolled per-row DMA
    loop stays short; tiny sequences use the whole sequence as one tile."""
    for t in (64, 32, 16, 8):
        if seq_len % t == 0:
            return t
    return seq_len


def embeddings_forward(input_ids, segment_ids, token_table, pos_table, seg_table):
    """Pallas equivalent of Embeddings.forward(input_ids, segment_ids, training=False)."""
    B, S = input_ids.shape
    V, H = token_table.shape
    tile_s = _pick_tile_s(S)
    n_s = S // tile_s

    # Flat token ids -> SMEM via scalar prefetch (they drive the gather DMAs).
    tok_flat = input_ids.astype(jnp.int32).reshape(B * S)
    # Segment ids stay a (B, S, 1) vector operand for the vectorized 3-way select.
    seg3 = segment_ids.astype(jnp.int32).reshape(B, S, 1)

    # Explicit scoped-VMEM budget: 2x out tile + 2x pos tile + gather scratch
    # + resident segment table + id tiles, with lane/sublane padding and headroom.
    lane = lambda n: ((n + 127) // 128) * 128
    sub = lambda n: ((n + 7) // 8) * 8
    itemsize = token_table.dtype.itemsize
    tile_bytes = sub(tile_s) * lane(H) * itemsize
    need = (2 * tile_bytes                               # output (double-buffered)
            + 2 * tile_bytes                             # positional tile
            + tile_bytes                                 # gather scratch
            + 2 * sub(3) * lane(H) * itemsize            # segment table
            + 2 * sub(tile_s) * 128 * 4)                 # segment-id tile
    vmem_limit = int(min(48 * 1024 * 1024, max(4 * 1024 * 1024, 6 * need)))

    grid_spec = pltpu.PrefetchScalarGridSpec(
        num_scalar_prefetch=1,
        grid=(n_s, B),                   # longer axis first -> even megacore split
        in_specs=[
            pl.BlockSpec((1, tile_s, 1), lambda s, b, tok: (b, s, 0)),  # segment ids
            pl.BlockSpec(memory_space=pl.ANY),                          # vocab table (HBM)
            pl.BlockSpec((tile_s, H), lambda s, b, tok: (s, 0)),        # positional tile
            pl.BlockSpec((3, H), lambda s, b, tok: (0, 0)),             # segment table
        ],
        out_specs=pl.BlockSpec((1, tile_s, H), lambda s, b, tok: (b, s, 0)),
        scratch_shapes=[
            pltpu.VMEM((tile_s, H), token_table.dtype),
            pltpu.SemaphoreType.DMA((tile_s,)),
        ],
    )

    out = pl.pallas_call(
        _embed_kernel,
        out_shape=jax.ShapeDtypeStruct((B, S, H), token_table.dtype),
        grid_spec=grid_spec,
        compiler_params=pltpu.CompilerParams(
            dimension_semantics=("parallel", "parallel"),
            vmem_limit_bytes=vmem_limit),
    )(tok_flat, seg3, token_table, pos_table, seg_table)

    return out


def forward_mask(input_ids):
    """Equivalent of Embeddings.forward_mask — trivial elementwise compare (plain JAX)."""
    return input_ids != 0


def sinusoidal_positional_table(seq_len, hidden):
    """Standard transformer sinusoidal positional encoding table (S, H)."""
    pos = jnp.arange(seq_len, dtype=jnp.float32)[:, None]
    i = jnp.arange(hidden)[None, :]
    angle_rates = 1.0 / jnp.power(
        10000.0, (2.0 * (i // 2)).astype(jnp.float32) / float(hidden))
    angles = pos * angle_rates
    return jnp.where(i % 2 == 0, jnp.sin(angles), jnp.cos(angles)).astype(jnp.float32)


if __name__ == "__main__":
    # Small config: vocab=64, hidden=32, batch=2, seq=8
    VOCAB, HIDDEN, B, S = 64, 32, 2, 8

    key = jax.random.PRNGKey(0)
    k_tok, k_seg_tbl, k_ids, k_seg = jax.random.split(key, 4)

    # Deterministic "parameters" (nn.Embedding weights), normal init like PyTorch default.
    token_table = jax.random.normal(k_tok, (VOCAB, HIDDEN), dtype=jnp.float32) * 0.02
    seg_table = jax.random.normal(k_seg_tbl, (3, HIDDEN), dtype=jnp.float32) * 0.02
    pos_table = sinusoidal_positional_table(S, HIDDEN)

    input_ids = jax.random.randint(k_ids, (B, S), 1, VOCAB, dtype=jnp.int32)
    segment_ids = jax.random.randint(k_seg, (B, S), 0, 3, dtype=jnp.int32)

    out = embeddings_forward(input_ids, segment_ids, token_table, pos_table, seg_table)
    out = jax.block_until_ready(out)

    # Reference check in plain JAX (same semantics as the PyTorch forward, training=False).
    ref = (token_table[input_ids]
           + pos_table[None, :, :]
           + seg_table[segment_ids])
    assert out.shape == (B, S, HIDDEN)
    assert jnp.allclose(out, ref, atol=1e-6), "mismatch vs reference"

    _ = jax.block_until_ready(forward_mask(input_ids))

    print("KERNEL_OK")
</pallas_src>

<mosaic_0001>
module attributes {stable_mosaic.version = 11 : i64} {
  func.func @_embed_kernel(%arg0: i32, %arg1: i32, %arg2: memref<16xi32, #tpu.memory_space<smem>>, %arg3: memref<1x8x1xi32, #tpu.memory_space<vmem>>, %arg4: memref<64x32xf32, #tpu.memory_space<any>>, %arg5: memref<8x32xf32, #tpu.memory_space<vmem>>, %arg6: memref<3x32xf32, #tpu.memory_space<vmem>>, %arg7: memref<1x8x32xf32, #tpu.memory_space<vmem>>, %arg8: memref<8x32xf32, #tpu.memory_space<vmem>>, %arg9: memref<8x!tpu.dma_semaphore, #tpu.memory_space<semaphore_mem>>) attributes {dimension_semantics = [#tpu.dimension_semantics<parallel>, #tpu.dimension_semantics<parallel>], iteration_bounds = array<i64: 1, 2>, scalar_prefetch = 1 : i64, scratch_operands = 2 : i64, tpu.core_type = #tpu.core_type<tc>, window_params = [{transform_indices = @transform_0, window_bounds = array<i64: 1, 8, 1>}, {}, {transform_indices = @transform_2, window_bounds = array<i64: 8, 32>}, {pipeline_mode = #tpu.pipeline_mode<synchronous>, transform_indices = @transform_3, window_bounds = array<i64: 3, 32>}, {transform_indices = @transform_4, window_bounds = array<i64: 1, 8, 32>}]} {
    %c8_i32 = arith.constant 8 : i32
    %0 = arith.muli %arg1, %c8_i32 : i32
    %c8_i32_0 = arith.constant 8 : i32
    %1 = arith.muli %arg0, %c8_i32_0 : i32
    %2 = arith.addi %0, %1 : i32
    %c0_i32 = arith.constant 0 : i32
    %3 = arith.addi %2, %c0_i32 : i32
    %4 = arith.index_cast %3 : i32 to index
    %5 = memref.load %arg2[%4] : memref<16xi32, #tpu.memory_space<smem>>
    %c0_i32_1 = arith.constant 0 : i32
    %c0_i32_2 = arith.constant 0 : i32
    %6 = tpu.memref_slice %arg4[%5, %c0_i32_2] : memref<64x32xf32, #tpu.memory_space<any>> -> memref<1x32xf32, #tpu.memory_space<any>>
    %c0_i32_3 = arith.constant 0 : i32
    %c0_i32_4 = arith.constant 0 : i32
    %7 = tpu.memref_slice %arg8[%c0_i32_3, %c0_i32_4] : memref<8x32xf32, #tpu.memory_space<vmem>> -> memref<1x32xf32, #tpu.memory_space<vmem>>
    %8 = tpu.memref_slice %arg9[%c0_i32_1] : memref<8x!tpu.dma_semaphore, #tpu.memory_space<semaphore_mem>> -> memref<1x!tpu.dma_semaphore, #tpu.memory_space<semaphore_mem>>
    %9 = tpu.memref_squeeze %8 : memref<1x!tpu.dma_semaphore, #tpu.memory_space<semaphore_mem>> -> memref<!tpu.dma_semaphore, #tpu.memory_space<semaphore_mem>>
    tpu.enqueue_dma source(%6 : memref<1x32xf32, #tpu.memory_space<any>>) target(%7 : memref<1x32xf32, #tpu.memory_space<vmem>>) target_semaphore(%9 : memref<!tpu.dma_semaphore, #tpu.memory_space<semaphore_mem>>)
    %c1_i32 = arith.constant 1 : i32
    %10 = arith.addi %2, %c1_i32 : i32
    %11 = arith.index_cast %10 : i32 to index
    %12 = memref.load %arg2[%11] : memref<16xi32, #tpu.memory_space<smem>>
    %c1_i32_5 = arith.constant 1 : i32
    %c0_i32_6 = arith.constant 0 : i32
    %13 = tpu.memref_slice %arg4[%12, %c0_i32_6] : memref<64x32xf32, #tpu.memory_space<any>> -> memref<1x32xf32, #tpu.memory_space<any>>
    %c1_i32_7 = arith.constant 1 : i32
    %c0_i32_8 = arith.constant 0 : i32
    %14 = tpu.memref_slice %arg8[%c1_i32_7, %c0_i32_8] : memref<8x32xf32, #tpu.memory_space<vmem>> -> memref<1x32xf32, #tpu.memory_space<vmem>>
    %15 = tpu.memref_slice %arg9[%c1_i32_5] : memref<8x!tpu.dma_semaphore, #tpu.memory_space<semaphore_mem>> -> memref<1x!tpu.dma_semaphore, #tpu.memory_space<semaphore_mem>>
    %16 = tpu.memref_squeeze %15 : memref<1x!tpu.dma_semaphore, #tpu.memory_space<semaphore_mem>> -> memref<!tpu.dma_semaphore, #tpu.memory_space<semaphore_mem>>
    tpu.enqueue_dma source(%13 : memref<1x32xf32, #tpu.memory_space<any>>) target(%14 : memref<1x32xf32, #tpu.memory_space<vmem>>) target_semaphore(%16 : memref<!tpu.dma_semaphore, #tpu.memory_space<semaphore_mem>>)
    %c2_i32 = arith.constant 2 : i32
    %17 = arith.addi %2, %c2_i32 : i32
    %18 = arith.index_cast %17 : i32 to index
    %19 = memref.load %arg2[%18] : memref<16xi32, #tpu.memory_space<smem>>
    %c2_i32_9 = arith.constant 2 : i32
    %c0_i32_10 = arith.constant 0 : i32
    %20 = tpu.memref_slice %arg4[%19, %c0_i32_10] : memref<64x32xf32, #tpu.memory_space<any>> -> memref<1x32xf32, #tpu.memory_space<any>>
    %c2_i32_11 = arith.constant 2 : i32
    %c0_i32_12 = arith.constant 0 : i32
    %21 = tpu.memref_slice %arg8[%c2_i32_11, %c0_i32_12] : memref<8x32xf32, #tpu.memory_space<vmem>> -> memref<1x32xf32, #tpu.memory_space<vmem>>
    %22 = tpu.memref_slice %arg9[%c2_i32_9] : memref<8x!tpu.dma_semaphore, #tpu.memory_space<semaphore_mem>> -> memref<1x!tpu.dma_semaphore, #tpu.memory_space<semaphore_mem>>
    %23 = tpu.memref_squeeze %22 : memref<1x!tpu.dma_semaphore, #tpu.memory_space<semaphore_mem>> -> memref<!tpu.dma_semaphore, #tpu.memory_space<semaphore_mem>>
    tpu.enqueue_dma source(%20 : memref<1x32xf32, #tpu.memory_space<any>>) target(%21 : memref<1x32xf32, #tpu.memory_space<vmem>>) target_semaphore(%23 : memref<!tpu.dma_semaphore, #tpu.memory_space<semaphore_mem>>)
    %c3_i32 = arith.constant 3 : i32
    %24 = arith.addi %2, %c3_i32 : i32
    %25 = arith.index_cast %24 : i32 to index
    %26 = memref.load %arg2[%25] : memref<16xi32, #tpu.memory_space<smem>>
    %c3_i32_13 = arith.constant 3 : i32
    %c0_i32_14 = arith.constant 0 : i32
    %27 = tpu.memref_slice %arg4[%26, %c0_i32_14] : memref<64x32xf32, #tpu.memory_space<any>> -> memref<1x32xf32, #tpu.memory_space<any>>
    %c3_i32_15 = arith.constant 3 : i32
    %c0_i32_16 = arith.constant 0 : i32
    %28 = tpu.memref_slice %arg8[%c3_i32_15, %c0_i32_16] : memref<8x32xf32, #tpu.memory_space<vmem>> -> memref<1x32xf32, #tpu.memory_space<vmem>>
    %29 = tpu.memref_slice %arg9[%c3_i32_13] : memref<8x!tpu.dma_semaphore, #tpu.memory_space<semaphore_mem>> -> memref<1x!tpu.dma_semaphore, #tpu.memory_space<semaphore_mem>>
    %30 = tpu.memref_squeeze %29 : memref<1x!tpu.dma_semaphore, #tpu.memory_space<semaphore_mem>> -> memref<!tpu.dma_semaphore, #tpu.memory_space<semaphore_mem>>
    tpu.enqueue_dma source(%27 : memref<1x32xf32, #tpu.memory_space<any>>) target(%28 : memref<1x32xf32, #tpu.memory_space<vmem>>) target_semaphore(%30 : memref<!tpu.dma_semaphore, #tpu.memory_space<semaphore_mem>>)
    %c4_i32 = arith.constant 4 : i32
    %31 = arith.addi %2, %c4_i32 : i32
    %32 = arith.index_cast %31 : i32 to index
    %33 = memref.load %arg2[%32] : memref<16xi32, #tpu.memory_space<smem>>
    %c4_i32_17 = arith.constant 4 : i32
    %c0_i32_18 = arith.constant 0 : i32
    %34 = tpu.memref_slice %arg4[%33, %c0_i32_18] : memref<64x32xf32, #tpu.memory_space<any>> -> memref<1x32xf32, #tpu.memory_space<any>>
    %c4_i32_19 = arith.constant 4 : i32
    %c0_i32_20 = arith.constant 0 : i32
    %35 = tpu.memref_slice %arg8[%c4_i32_19, %c0_i32_20] : memref<8x32xf32, #tpu.memory_space<vmem>> -> memref<1x32xf32, #tpu.memory_space<vmem>>
    %36 = tpu.memref_slice %arg9[%c4_i32_17] : memref<8x!tpu.dma_semaphore, #tpu.memory_space<semaphore_mem>> -> memref<1x!tpu.dma_semaphore, #tpu.memory_space<semaphore_mem>>
    %37 = tpu.memref_squeeze %36 : memref<1x!tpu.dma_semaphore, #tpu.memory_space<semaphore_mem>> -> memref<!tpu.dma_semaphore, #tpu.memory_space<semaphore_mem>>
    tpu.enqueue_dma source(%34 : memref<1x32xf32, #tpu.memory_space<any>>) target(%35 : memref<1x32xf32, #tpu.memory_space<vmem>>) target_semaphore(%37 : memref<!tpu.dma_semaphore, #tpu.memory_space<semaphore_mem>>)
    %c5_i32 = arith.constant 5 : i32
    %38 = arith.addi %2, %c5_i32 : i32
    %39 = arith.index_cast %38 : i32 to index
    %40 = memref.load %arg2[%39] : memref<16xi32, #tpu.memory_space<smem>>
    %c5_i32_21 = arith.constant 5 : i32
    %c0_i32_22 = arith.constant 0 : i32
    %41 = tpu.memref_slice %arg4[%40, %c0_i32_22] : memref<64x32xf32, #tpu.memory_space<any>> -> memref<1x32xf32, #tpu.memory_space<any>>
    %c5_i32_23 = arith.constant 5 : i32
    %c0_i32_24 = arith.constant 0 : i32
    %42 = tpu.memref_slice %arg8[%c5_i32_23, %c0_i32_24] : memref<8x32xf32, #tpu.memory_space<vmem>> -> memref<1x32xf32, #tpu.memory_space<vmem>>
    %43 = tpu.memref_slice %arg9[%c5_i32_21] : memref<8x!tpu.dma_semaphore, #tpu.memory_space<semaphore_mem>> -> memref<1x!tpu.dma_semaphore, #tpu.memory_space<semaphore_mem>>
    %44 = tpu.memref_squeeze %43 : memref<1x!tpu.dma_semaphore, #tpu.memory_space<semaphore_mem>> -> memref<!tpu.dma_semaphore, #tpu.memory_space<semaphore_mem>>
    tpu.enqueue_dma source(%41 : memref<1x32xf32, #tpu.memory_space<any>>) target(%42 : memref<1x32xf32, #tpu.memory_space<vmem>>) target_semaphore(%44 : memref<!tpu.dma_semaphore, #tpu.memory_space<semaphore_mem>>)
    %c6_i32 = arith.constant 6 : i32
    %45 = arith.addi %2, %c6_i32 : i32
    %46 = arith.index_cast %45 : i32 to index
    %47 = memref.load %arg2[%46] : memref<16xi32, #tpu.memory_space<smem>>
    %c6_i32_25 = arith.constant 6 : i32
    %c0_i32_26 = arith.constant 0 : i32
    %48 = tpu.memref_slice %arg4[%47, %c0_i32_26] : memref<64x32xf32, #tpu.memory_space<any>> -> memref<1x32xf32, #tpu.memory_space<any>>
    %c6_i32_27 = arith.constant 6 : i32
    %c0_i32_28 = arith.constant 0 : i32
    %49 = tpu.memref_slice %arg8[%c6_i32_27, %c0_i32_28] : memref<8x32xf32, #tpu.memory_space<vmem>> -> memref<1x32xf32, #tpu.memory_space<vmem>>
    %50 = tpu.memref_slice %arg9[%c6_i32_25] : memref<8x!tpu.dma_semaphore, #tpu.memory_space<semaphore_mem>> -> memref<1x!tpu.dma_semaphore, #tpu.memory_space<semaphore_mem>>
    %51 = tpu.memref_squeeze %50 : memref<1x!tpu.dma_semaphore, #tpu.memory_space<semaphore_mem>> -> memref<!tpu.dma_semaphore, #tpu.memory_space<semaphore_mem>>
    tpu.enqueue_dma source(%48 : memref<1x32xf32, #tpu.memory_space<any>>) target(%49 : memref<1x32xf32, #tpu.memory_space<vmem>>) target_semaphore(%51 : memref<!tpu.dma_semaphore, #tpu.memory_space<semaphore_mem>>)
    %c7_i32 = arith.constant 7 : i32
    %52 = arith.addi %2, %c7_i32 : i32
    %53 = arith.index_cast %52 : i32 to index
    %54 = memref.load %arg2[%53] : memref<16xi32, #tpu.memory_space<smem>>
    %c7_i32_29 = arith.constant 7 : i32
    %c0_i32_30 = arith.constant 0 : i32
    %55 = tpu.memref_slice %arg4[%54, %c0_i32_30] : memref<64x32xf32, #tpu.memory_space<any>> -> memref<1x32xf32, #tpu.memory_space<any>>
    %c7_i32_31 = arith.constant 7 : i32
    %c0_i32_32 = arith.constant 0 : i32
    %56 = tpu.memref_slice %arg8[%c7_i32_31, %c0_i32_32] : memref<8x32xf32, #tpu.memory_space<vmem>> -> memref<1x32xf32, #tpu.memory_space<vmem>>
    %57 = tpu.memref_slice %arg9[%c7_i32_29] : memref<8x!tpu.dma_semaphore, #tpu.memory_space<semaphore_mem>> -> memref<1x!tpu.dma_semaphore, #tpu.memory_space<semaphore_mem>>
    %58 = tpu.memref_squeeze %57 : memref<1x!tpu.dma_semaphore, #tpu.memory_space<semaphore_mem>> -> memref<!tpu.dma_semaphore, #tpu.memory_space<semaphore_mem>>
    tpu.enqueue_dma source(%55 : memref<1x32xf32, #tpu.memory_space<any>>) target(%56 : memref<1x32xf32, #tpu.memory_space<vmem>>) target_semaphore(%58 : memref<!tpu.dma_semaphore, #tpu.memory_space<semaphore_mem>>)
    %c0 = arith.constant 0 : index
    %c0_33 = arith.constant 0 : index
    %c0_34 = arith.constant 0 : index
    %59 = vector.load %arg3[%c0, %c0_33, %c0_34] : memref<1x8x1xi32, #tpu.memory_space<vmem>>, vector<1x8x1xi32>
    %60 = vector.shape_cast %59 : vector<1x8x1xi32> to vector<8x1xi32>
    %c0_i32_35 = arith.constant 0 : i32
    %61 = vector.broadcast %c0_i32_35 : i32 to vector<8x1xi32>
    %62 = arith.cmpi eq, %60, %61 : vector<8x1xi32>
    %c0_36 = arith.constant 0 : index
    %c0_37 = arith.constant 0 : index
    %63 = vector.load %arg6[%c0_36, %c0_37] : memref<3x32xf32, #tpu.memory_space<vmem>>, vector<1x32xf32>
    %c1_i32_38 = arith.constant 1 : i32
    %64 = vector.broadcast %c1_i32_38 : i32 to vector<8x1xi32>
    %65 = arith.cmpi eq, %60, %64 : vector<8x1xi32>
    %c1 = arith.constant 1 : index
    %c0_39 = arith.constant 0 : index
    %66 = vector.load %arg6[%c1, %c0_39] : memref<3x32xf32, #tpu.memory_space<vmem>>, vector<1x32xf32>
    %c2 = arith.constant 2 : index
    %c0_40 = arith.constant 0 : index
    %67 = vector.load %arg6[%c2, %c0_40] : memref<3x32xf32, #tpu.memory_space<vmem>>, vector<1x32xf32>
    %68 = vector.shape_cast %65 : vector<8x1xi1> to vector<8x1xi1>
    %69 = vector.broadcast %68 : vector<8x1xi1> to vector<8x32xi1>
    %70 = vector.shape_cast %66 : vector<1x32xf32> to vector<1x32xf32>
    %71 = vector.broadcast %70 : vector<1x32xf32> to vector<8x32xf32>
    %72 = vector.shape_cast %67 : vector<1x32xf32> to vector<1x32xf32>
    %73 = vector.broadcast %72 : vector<1x32xf32> to vector<8x32xf32>
    %74 = arith.select %69, %71, %73 : vector<8x32xi1>, vector<8x32xf32>
    %75 = vector.shape_cast %62 : vector<8x1xi1> to vector<8x1xi1>
    %76 = vector.broadcast %75 : vector<8x1xi1> to vector<8x32xi1>
    %77 = vector.shape_cast %63 : vector<1x32xf32> to vector<1x32xf32>
    %78 = vector.broadcast %77 : vector<1x32xf32> to vector<8x32xf32>
    %79 = arith.select %76, %78, %74 : vector<8x32xi1>, vector<8x32xf32>
    %c0_i32_41 = arith.constant 0 : i32
    %c0_i32_42 = arith.constant 0 : i32
    %80 = tpu.memref_slice %arg4[%5, %c0_i32_42] : memref<64x32xf32, #tpu.memory_space<any>> -> memref<1x32xf32, #tpu.memory_space<any>>
    %c0_i32_43 = arith.constant 0 : i32
    %c0_i32_44 = arith.constant 0 : i32
    %81 = tpu.memref_slice %arg8[%c0_i32_43, %c0_i32_44] : memref<8x32xf32, #tpu.memory_space<vmem>> -> memref<1x32xf32, #tpu.memory_space<vmem>>
    %82 = tpu.memref_slice %arg9[%c0_i32_41] : memref<8x!tpu.dma_semaphore, #tpu.memory_space<semaphore_mem>> -> memref<1x!tpu.dma_semaphore, #tpu.memory_space<semaphore_mem>>
    %83 = tpu.memref_squeeze %82 : memref<1x!tpu.dma_semaphore, #tpu.memory_space<semaphore_mem>> -> memref<!tpu.dma_semaphore, #tpu.memory_space<semaphore_mem>>
    tpu.wait_dma2 semaphore(%83 : memref<!tpu.dma_semaphore, #tpu.memory_space<semaphore_mem>>) src(%80 : memref<1x32xf32, #tpu.memory_space<any>>) dst(%81 : memref<1x32xf32, #tpu.memory_space<vmem>>)
    %c1_i32_45 = arith.constant 1 : i32
    %c0_i32_46 = arith.constant 0 : i32
    %84 = tpu.memref_slice %arg4[%12, %c0_i32_46] : memref<64x32xf32, #tpu.memory_space<any>> -> memref<1x32xf32, #tpu.memory_space<any>>
    %c1_i32_47 = arith.constant 1 : i32
    %c0_i32_48 = arith.constant 0 : i32
    %85 = tpu.memref_slice %arg8[%c1_i32_47, %c0_i32_48] : memref<8x32xf32, #tpu.memory_space<vmem>> -> memref<1x32xf32, #tpu.memory_space<vmem>>
    %86 = tpu.memref_slice %arg9[%c1_i32_45] : memref<8x!tpu.dma_semaphore, #tpu.memory_space<semaphore_mem>> -> memref<1x!tpu.dma_semaphore, #tpu.memory_space<semaphore_mem>>
    %87 = tpu.memref_squeeze %86 : memref<1x!tpu.dma_semaphore, #tpu.memory_space<semaphore_mem>> -> memref<!tpu.dma_semaphore, #tpu.memory_space<semaphore_mem>>
    tpu.wait_dma2 semaphore(%87 : memref<!tpu.dma_semaphore, #tpu.memory_space<semaphore_mem>>) src(%84 : memref<1x32xf32, #tpu.memory_space<any>>) dst(%85 : memref<1x32xf32, #tpu.memory_space<vmem>>)
    %c2_i32_49 = arith.constant 2 : i32
    %c0_i32_50 = arith.constant 0 : i32
    %88 = tpu.memref_slice %arg4[%19, %c0_i32_50] : memref<64x32xf32, #tpu.memory_space<any>> -> memref<1x32xf32, #tpu.memory_space<any>>
    %c2_i32_51 = arith.constant 2 : i32
    %c0_i32_52 = arith.constant 0 : i32
    %89 = tpu.memref_slice %arg8[%c2_i32_51, %c0_i32_52] : memref<8x32xf32, #tpu.memory_space<vmem>> -> memref<1x32xf32, #tpu.memory_space<vmem>>
    %90 = tpu.memref_slice %arg9[%c2_i32_49] : memref<8x!tpu.dma_semaphore, #tpu.memory_space<semaphore_mem>> -> memref<1x!tpu.dma_semaphore, #tpu.memory_space<semaphore_mem>>
    %91 = tpu.memref_squeeze %90 : memref<1x!tpu.dma_semaphore, #tpu.memory_space<semaphore_mem>> -> memref<!tpu.dma_semaphore, #tpu.memory_space<semaphore_mem>>
    tpu.wait_dma2 semaphore(%91 : memref<!tpu.dma_semaphore, #tpu.memory_space<semaphore_mem>>) src(%88 : memref<1x32xf32, #tpu.memory_space<any>>) dst(%89 : memref<1x32xf32, #tpu.memory_space<vmem>>)
    %c3_i32_53 = arith.constant 3 : i32
    %c0_i32_54 = arith.constant 0 : i32
    %92 = tpu.memref_slice %arg4[%26, %c0_i32_54] : memref<64x32xf32, #tpu.memory_space<any>> -> memref<1x32xf32, #tpu.memory_space<any>>
    %c3_i32_55 = arith.constant 3 : i32
    %c0_i32_56 = arith.constant 0 : i32
    %93 = tpu.memref_slice %arg8[%c3_i32_55, %c0_i32_56] : memref<8x32xf32, #tpu.memory_space<vmem>> -> memref<1x32xf32, #tpu.memory_space<vmem>>
    %94 = tpu.memref_slice %arg9[%c3_i32_53] : memref<8x!tpu.dma_semaphore, #tpu.memory_space<semaphore_mem>> -> memref<1x!tpu.dma_semaphore, #tpu.memory_space<semaphore_mem>>
    %95 = tpu.memref_squeeze %94 : memref<1x!tpu.dma_semaphore, #tpu.memory_space<semaphore_mem>> -> memref<!tpu.dma_semaphore, #tpu.memory_space<semaphore_mem>>
    tpu.wait_dma2 semaphore(%95 : memref<!tpu.dma_semaphore, #tpu.memory_space<semaphore_mem>>) src(%92 : memref<1x32xf32, #tpu.memory_space<any>>) dst(%93 : memref<1x32xf32, #tpu.memory_space<vmem>>)
    %c4_i32_57 = arith.constant 4 : i32
    %c0_i32_58 = arith.constant 0 : i32
    %96 = tpu.memref_slice %arg4[%33, %c0_i32_58] : memref<64x32xf32, #tpu.memory_space<any>> -> memref<1x32xf32, #tpu.memory_space<any>>
    %c4_i32_59 = arith.constant 4 : i32
    %c0_i32_60 = arith.constant 0 : i32
    %97 = tpu.memref_slice %arg8[%c4_i32_59, %c0_i32_60] : memref<8x32xf32, #tpu.memory_space<vmem>> -> memref<1x32xf32, #tpu.memory_space<vmem>>
    %98 = tpu.memref_slice %arg9[%c4_i32_57] : memref<8x!tpu.dma_semaphore, #tpu.memory_space<semaphore_mem>> -> memref<1x!tpu.dma_semaphore, #tpu.memory_space<semaphore_mem>>
    %99 = tpu.memref_squeeze %98 : memref<1x!tpu.dma_semaphore, #tpu.memory_space<semaphore_mem>> -> memref<!tpu.dma_semaphore, #tpu.memory_space<semaphore_mem>>
    tpu.wait_dma2 semaphore(%99 : memref<!tpu.dma_semaphore, #tpu.memory_space<semaphore_mem>>) src(%96 : memref<1x32xf32, #tpu.memory_space<any>>) dst(%97 : memref<1x32xf32, #tpu.memory_space<vmem>>)
    %c5_i32_61 = arith.constant 5 : i32
    %c0_i32_62 = arith.constant 0 : i32
    %100 = tpu.memref_slice %arg4[%40, %c0_i32_62] : memref<64x32xf32, #tpu.memory_space<any>> -> memref<1x32xf32, #tpu.memory_space<any>>
    %c5_i32_63 = arith.constant 5 : i32
    %c0_i32_64 = arith.constant 0 : i32
    %101 = tpu.memref_slice %arg8[%c5_i32_63, %c0_i32_64] : memref<8x32xf32, #tpu.memory_space<vmem>> -> memref<1x32xf32, #tpu.memory_space<vmem>>
    %102 = tpu.memref_slice %arg9[%c5_i32_61] : memref<8x!tpu.dma_semaphore, #tpu.memory_space<semaphore_mem>> -> memref<1x!tpu.dma_semaphore, #tpu.memory_space<semaphore_mem>>
    %103 = tpu.memref_squeeze %102 : memref<1x!tpu.dma_semaphore, #tpu.memory_space<semaphore_mem>> -> memref<!tpu.dma_semaphore, #tpu.memory_space<semaphore_mem>>
    tpu.wait_dma2 semaphore(%103 : memref<!tpu.dma_semaphore, #tpu.memory_space<semaphore_mem>>) src(%100 : memref<1x32xf32, #tpu.memory_space<any>>) dst(%101 : memref<1x32xf32, #tpu.memory_space<vmem>>)
    %c6_i32_65 = arith.constant 6 : i32
    %c0_i32_66 = arith.constant 0 : i32
    %104 = tpu.memref_slice %arg4[%47, %c0_i32_66] : memref<64x32xf32, #tpu.memory_space<any>> -> memref<1x32xf32, #tpu.memory_space<any>>
    %c6_i32_67 = arith.constant 6 : i32
    %c0_i32_68 = arith.constant 0 : i32
    %105 = tpu.memref_slice %arg8[%c6_i32_67, %c0_i32_68] : memref<8x32xf32, #tpu.memory_space<vmem>> -> memref<1x32xf32, #tpu.memory_space<vmem>>
    %106 = tpu.memref_slice %arg9[%c6_i32_65] : memref<8x!tpu.dma_semaphore, #tpu.memory_space<semaphore_mem>> -> memref<1x!tpu.dma_semaphore, #tpu.memory_space<semaphore_mem>>
    %107 = tpu.memref_squeeze %106 : memref<1x!tpu.dma_semaphore, #tpu.memory_space<semaphore_mem>> -> memref<!tpu.dma_semaphore, #tpu.memory_space<semaphore_mem>>
    tpu.wait_dma2 semaphore(%107 : memref<!tpu.dma_semaphore, #tpu.memory_space<semaphore_mem>>) src(%104 : memref<1x32xf32, #tpu.memory_space<any>>) dst(%105 : memref<1x32xf32, #tpu.memory_space<vmem>>)
    %c7_i32_69 = arith.constant 7 : i32
    %c0_i32_70 = arith.constant 0 : i32
    %108 = tpu.memref_slice %arg4[%54, %c0_i32_70] : memref<64x32xf32, #tpu.memory_space<any>> -> memref<1x32xf32, #tpu.memory_space<any>>
    %c7_i32_71 = arith.constant 7 : i32
    %c0_i32_72 = arith.constant 0 : i32
    %109 = tpu.memref_slice %arg8[%c7_i32_71, %c0_i32_72] : memref<8x32xf32, #tpu.memory_space<vmem>> -> memref<1x32xf32, #tpu.memory_space<vmem>>
    %110 = tpu.memref_slice %arg9[%c7_i32_69] : memref<8x!tpu.dma_semaphore, #tpu.memory_space<semaphore_mem>> -> memref<1x!tpu.dma_semaphore, #tpu.memory_space<semaphore_mem>>
    %111 = tpu.memref_squeeze %110 : memref<1x!tpu.dma_semaphore, #tpu.memory_space<semaphore_mem>> -> memref<!tpu.dma_semaphore, #tpu.memory_space<semaphore_mem>>
    tpu.wait_dma2 semaphore(%111 : memref<!tpu.dma_semaphore, #tpu.memory_space<semaphore_mem>>) src(%108 : memref<1x32xf32, #tpu.memory_space<any>>) dst(%109 : memref<1x32xf32, #tpu.memory_space<vmem>>)
    %c0_73 = arith.constant 0 : index
    %c0_74 = arith.constant 0 : index
    %112 = vector.load %arg8[%c0_73, %c0_74] : memref<8x32xf32, #tpu.memory_space<vmem>>, vector<8x32xf32>
    %c0_75 = arith.constant 0 : index
    %c0_76 = arith.constant 0 : index
    %113 = vector.load %arg5[%c0_75, %c0_76] : memref<8x32xf32, #tpu.memory_space<vmem>>, vector<8x32xf32>
    %114 = arith.addf %112, %113 : vector<8x32xf32>
    %115 = arith.addf %114, %79 : vector<8x32xf32>
    %c0_77 = arith.constant 0 : index
    %c0_78 = arith.constant 0 : index
    %c0_79 = arith.constant 0 : index
    %116 = vector.load %arg7[%c0_77, %c0_78, %c0_79] : memref<1x8x32xf32, #tpu.memory_space<vmem>>, vector<1x8x32xf32>
    %117 = vector.shape_cast %116 : vector<1x8x32xf32> to vector<8x32xf32>
    %118 = vector.shape_cast %115 : vector<8x32xf32> to vector<1x8x32xf32>
    tpu.vector_store %arg7[%c0_77, %c0_78, %c0_79], %118 {strides = array<i32>} : memref<1x8x32xf32, #tpu.memory_space<vmem>>, vector<1x8x32xf32>,
    return
  }
  func.func @transform_0(%arg0: i32, %arg1: i32, %arg2: memref<16xi32, #tpu.memory_space<smem>>) -> (i32, i32, i32) {
    %c0_i32 = arith.constant 0 : i32
    %c0_i32_0 = arith.constant 0 : i32
    return %arg1, %arg0, %c0_i32 : i32, i32, i32
  }
  func.func @transform_2(%arg0: i32, %arg1: i32, %arg2: memref<16xi32, #tpu.memory_space<smem>>) -> (i32, i32) {
    %c0_i32 = arith.constant 0 : i32
    %c0_i32_0 = arith.constant 0 : i32
    return %arg0, %c0_i32 : i32, i32
  }
  func.func @transform_3(%arg0: i32, %arg1: i32, %arg2: memref<16xi32, #tpu.memory_space<smem>>) -> (i32, i32) {
    %c0_i32 = arith.constant 0 : i32
    %c0_i32_0 = arith.constant 0 : i32
    %c0_i32_1 = arith.constant 0 : i32
    return %c0_i32, %c0_i32_0 : i32, i32
  }
  func.func @transform_4(%arg0: i32, %arg1: i32, %arg2: memref<16xi32, #tpu.memory_space<smem>>) -> (i32, i32, i32) {
    %c0_i32 = arith.constant 0 : i32
    %c0_i32_0 = arith.constant 0 : i32
    return %arg1, %arg0, %c0_i32 : i32, i32, i32
  }
}

</mosaic_0001>

<llo_original>
// kernel: tpu_custom_call.1
$region0: #{tpu_custom_call.1}
  #allocation0 [shape = 'u32[]', space=smem, size = 0x4, offset = 0x4, fixed_abs, tag = 'smem constant byte address 0x4 - core index']
  #allocation1 [shape = 'u32[144,128]{1,0:T(1,128)}', space=vmem, size = 0x12000, scoped, tag = 'internal scratch']
  #allocation2 [shape = 'f32[8,32]{1,0:T(8,128)}', space=vmem, size = 0x1000, scoped, tag = 'scratch operand']
  #allocation3 [shape = 's32[8]{0}', space=sflag, size = 0x20, scoped, tag = 'scratch operand']
  #allocation4 [shape = 's32[1]{0}', space=sflag, size = 0x4, scoped, tag = 'scoped memory for tpu_custom_call.1']
  #allocation5 [shape = 'u8[512]{0}', space=smem, size = 0x200, scoped, tag = 'prefetched SMEM operand 0']
  #allocation8 [shape = 's32[]', space=sflag, size = 0x4, offset = 0, fixed_abs, tag = 'sflag constant byte address 0x0 - dummy sync flag']
  #allocation9 [shape = 's32[]', space=sflag, size = 0x4, offset = 0, fixed_abs, tag = 'sflag constant byte address 0x0 - dummy sync flag']
  #allocation10 [shape = 's32[]', space=sflag, size = 0x4, offset = 0, fixed_abs, tag = 'sflag constant byte address 0x0 - dummy sync flag']
  #allocation11 [shape = 's32[]', space=sflag, size = 0x4, offset = 0, fixed_abs, tag = 'sflag constant byte address 0x0 - dummy sync flag']
  #allocation12 [shape = 's32[]', space=sflag, size = 0x4, offset = 0, fixed_abs, tag = 'sflag constant byte address 0x0 - dummy sync flag']
  #allocation13 [shape = 's32[]', space=sflag, size = 0x4, offset = 0, fixed_abs, tag = 'sflag constant byte address 0x0 - dummy sync flag']
  #allocation14 [shape = 's32[]', space=sflag, size = 0x4, offset = 0, fixed_abs, tag = 'sflag constant byte address 0x0 - dummy sync flag']
  #allocation15 [shape = 's32[]', space=sflag, size = 0x4, offset = 0, fixed_abs, tag = 'sflag constant byte address 0x0 - dummy sync flag']
  %s0 = inlined_call_operand.vmem [shape: s32[16], index: 0, kind: input, shape index: {}]
  %s1 = inlined_call_operand.vmem [shape: s32[2,8,1], index: 1, kind: input, shape index: {}]
  %s2 = inlined_call_operand.vmem [shape: f32[64,32], index: 2, kind: input, shape index: {}]
  %s3 = inlined_call_operand.vmem [shape: f32[8,32], index: 3, kind: input, shape index: {}]
  %s4 = inlined_call_operand.vmem [shape: f32[3,32], index: 4, kind: input, shape index: {}]
  %s5 = inlined_call_operand.hbm [shape: f32[2,8,32], index: 5, kind: output, shape index: {}]
  %s6 = sld [smem:[#allocation0]]
  $region285: #{tpu_custom_call.1} parent=0
    _
  %s8 = ssub.s32 1, %s6
  %s9 = scalar_select 0, %s8, %s6
  %s10 = sshll.u32 %s0, 4
  %s11 = int_to_ptr.vmem [resolvable:$true] %s10
  %13 = dma.vmem_to_smem %s11, 16, [#allocation5], [#allocation4]
  %14 = dma.done [#allocation4], 16
  %15 = sfence
  $region1: #{tpu_custom_call.1} parent=0
    #allocation6 [shape = 'u8[8192]{0}', space=vmem, size = 0x2000, scoped, tag = 'output window, operand 0']
    #allocation7 [shape = 's32[2]{0}', space=sflag, size = 0x8, scoped, tag = 'scoped memory for tpu_custom_call.1']
    %16 = vsyncpa [#allocation7], 0
    %s17 = scalar_lea.sflag [#allocation7], 1
    %18 = vsyncpa %s17, 0
    loop: start=0, step=1, limit=4
    $region2: #{tpu_custom_call.1} parent=1 // loop_pre_header
      _
    $region3: #{tpu_custom_call.1} parent=1 // loop_header
      %s20 = sphi 0, %s24
      %p21 = scmp.ge.s32.totalorder %s20, 4
      %s27 = sphi 0, %s39
      %s28 = sphi 0, %s35
      %s29 = sphi 0, %s27
      %s30 = sphi 0, %s28
      %s31 = sphi 0, %s29
      %s32 = sphi 0, %s30
      %s44 = sphi 0, %s46
      %s47 = sphi 0, %s44
      %s48 = sphi 0, %s47
      %s64 = sphi 0, %s48
      %s70 = sphi 0, %s72
      %s73 = sphi 0, %s70
      %s74 = sphi 0, %s73
      %s90 = sphi 0, %s74
      %s94 = sphi 0, %s94
      %s96 = sphi 0, %s94
      %s97 = sphi 0, %s96
      %s111 = sphi 0, %s97
      %s119 = sphi 0, %s121
      %s122 = sphi 0, %s119
      %s123 = sphi 0, %s122
      %s139 = sphi 0, %s123
    $region4: #{tpu_custom_call.1} parent=1 // loop_header_branch
      %23 = sbr.rel (%p21) target = $region8
    $region5: #{tpu_custom_call.1} parent=1 // loop_body
      %s25 = ssub.s32 %s20, 1
      %s26 = ssub.s32 %s20, 2
      %s33 = sadd.s32 1, %s28
      %p34 = scmp.ge.s32.totalorder %s33, 2
      %s35 = scalar_select %p34, 0, %s33
      %s36 = sadd.s32 1, %s27
      %s37 = scalar_select %p34, %s36, %s27
      %p38 = scmp.ge.s32.totalorder %s37, 1
      %s39 = scalar_select %p38, 0, %s37
      %s40 = ssub.s32 %s28, %s35
      %s41 = ssub.s32 %s27, %s39
      %s42 = sor.u32 %s40, %s41
      %p43 = scmp.eq.s32.totalorder %s42, 0
      %s45 = sadd.s32 %s44, 1
      %s46 = scalar_select %p43, %s44, %s45
      %p49 = pneg %p43
      %p50 = scmp.eq.s32.totalorder %s20, 1
      %p51 = por %p49, %p50
      %p52 = scmp.ne.s32.totalorder %s44, %s47
      %p53 = scmp.eq.s32.totalorder %s20, 0
      %p54 = por %p52, %p53
      %p55 = scmp.ne.s32.totalorder %s44, %s47
      %p56 = scmp.eq.s32.totalorder %s25, 1
      %p57 = por %p55, %p56
      %p58 = scmp.ne.s32.totalorder %s47, %s48
      %p59 = scmp.eq.s32.totalorder %s25, 0
      %p60 = por %p58, %p59
      %p61 = scmp.ne.s32.totalorder %s47, %s48
      %p62 = scmp.eq.s32.totalorder %s26, 1
      %p63 = por %p61, %p62
      %p65 = scmp.ne.s32.totalorder %s48, %s64
      %p66 = scmp.eq.s32.totalorder %s26, 0
      %p67 = por %p65, %p66
      %s68 = ssub.s32 %s27, %s39
      %p69 = scmp.eq.s32.totalorder %s68, 0
      %s71 = sadd.s32 %s70, 1
      %s72 = scalar_select %p69, %s70, %s71
      %p75 = pneg %p69
      %p76 = scmp.eq.s32.totalorder %s20, 1
      %p77 = por %p75, %p76
      %p78 = scmp.ne.s32.totalorder %s70, %s73
      %p79 = scmp.eq.s32.totalorder %s20, 0
      %p80 = por %p78, %p79
      %p81 = scmp.ne.s32.totalorder %s70, %s73
      %p82 = scmp.eq.s32.totalorder %s25, 1
      %p83 = por %p81, %p82
      %p84 = scmp.ne.s32.totalorder %s73, %s74
      %p85 = scmp.eq.s32.totalorder %s25, 0
      %p86 = por %p84, %p85
      %p87 = scmp.ne.s32.totalorder %s73, %s74
      %p88 = scmp.eq.s32.totalorder %s26, 1
      %p89 = por %p87, %p88
      %p91 = scmp.ne.s32.totalorder %s74, %s90
      %p92 = scmp.eq.s32.totalorder %s26, 0
      %p93 = por %p91, %p92
      %s95 = sadd.s32 %s94, 1
      %p98 = scmp.eq.s32.totalorder %s20, 1
      %p99 = scmp.ne.s32.totalorder %s94, %s96
      %p100 = scmp.eq.s32.totalorder %s20, 0
      %p101 = por %p99, %p100
      %p102 = scmp.ne.s32.totalorder %s94, %s96
      %p103 = scmp.eq.s32.totalorder %s25, 1
      %p104 = por %p102, %p103
      %p105 = scmp.ne.s32.totalorder %s96, %s97
      %p106 = scmp.eq.s32.totalorder %s25, 0
      %p107 = por %p105, %p106
      %p108 = scmp.ne.s32.totalorder %s96, %s97
      %p109 = scmp.eq.s32.totalorder %s26, 1
      %p110 = por %p108, %p109
      %p112 = scmp.ne.s32.totalorder %s97, %s111
      %p113 = scmp.eq.s32.totalorder %s26, 0
      %p114 = por %p112, %p113
      %s115 = ssub.s32 %s28, %s35
      %s116 = ssub.s32 %s27, %s39
      %s117 = sor.u32 %s115, %s116
      %p118 = scmp.eq.s32.totalorder %s117, 0
      %s120 = sadd.s32 %s119, 1
      %s121 = scalar_select %p118, %s119, %s120
      %p124 = pneg %p118
      %p125 = scmp.eq.s32.totalorder %s20, 1
      %p126 = por %p124, %p125
      %p127 = scmp.ne.s32.totalorder %s119, %s122
      %p128 = scmp.eq.s32.totalorder %s20, 0
      %p129 = por %p127, %p128
      %p130 = scmp.ne.s32.totalorder %s119, %s122
      %p131 = scmp.eq.s32.totalorder %s25, 1
      %p132 = por %p130, %p131
      %p133 = scmp.ne.s32.totalorder %s122, %s123
      %p134 = scmp.eq.s32.totalorder %s25, 0
      %p135 = por %p133, %p134
      %p136 = scmp.ne.s32.totalorder %s122, %s123
      %p137 = scmp.eq.s32.totalorder %s26, 1
      %p138 = por %p136, %p137
      %p140 = scmp.ne.s32.totalorder %s123, %s139
      %p141 = scmp.eq.s32.totalorder %s26, 0
      %p142 = por %p140, %p141
      %p143 = scmp.le.s32.totalorder 1, %s20
      %p144 = scmp.lt.s32.totalorder %s20, 3
      %p145 = pnand %p143, %p144
      %p146 = pneg %p145
      // Predicated region
      $region9: #{tpu_custom_call.1} parent=5 // pred_check
        _
      $region10: #{tpu_custom_call.1} parent=5 // pred_check_branch
        %148 = sbr.rel (%p145) target = $region12
      $region11: #{tpu_custom_call.1} parent=5 // pred_region
        %s149 = ssub.s32 %s20, 1
        // Predicated region
        $region13: #{tpu_custom_call.1} parent=11 // pred_check
          %p150 = pneg %p86
        $region14: #{tpu_custom_call.1} parent=11 // pred_check_branch
          %152 = sbr.rel (%p150) target = $region16
        $region15: #{tpu_custom_call.1} parent=11 // pred_region
          %p153 = scmp.lt.s32.totalorder %s29, 0
          %s154 = scalar_select %p153, %s29, 0
          %s155 = smul.addr %s154, 8
          %s156 = scalar_lea.vmem %s3, %s155
        $region16: #{tpu_custom_call.1} parent=11 // pred_fallthru
          _
        // Predicated region
        $region17: #{tpu_custom_call.1} parent=11 // pred_check
          %p157 = pneg %p107
        $region18: #{tpu_custom_call.1} parent=11 // pred_check_branch
          %159 = sbr.rel (%p157) target = $region20
        $region19: #{tpu_custom_call.1} parent=11 // pred_region
          _
        $region20: #{tpu_custom_call.1} parent=11 // pred_fallthru
          _
      $region12: #{tpu_custom_call.1} parent=5 // pred_fallthru
        _
      %p160 = scmp.lt.s32.totalorder %s20, 2
      // Predicated region
      $region21: #{tpu_custom_call.1} parent=5 // pred_check
        %p161 = pneg %p160
      $region22: #{tpu_custom_call.1} parent=5 // pred_check_branch
        %163 = sbr.rel (%p161) target = $region24
      $region23: #{tpu_custom_call.1} parent=5 // pred_region
        // Predicated region
        $region25: #{tpu_custom_call.1} parent=23 // pred_check
          %p164 = pneg %p54
        $region26: #{tpu_custom_call.1} parent=23 // pred_check_branch
          %166 = sbr.rel (%p164) target = $region28
        $region27: #{tpu_custom_call.1} parent=23 // pred_region
          %p167 = scmp.lt.s32.totalorder %s28, 1
          %s168 = scalar_select %p167, %s28, 1
          %p169 = scmp.lt.s32.totalorder %s27, 0
          %s170 = scalar_select %p169, %s27, 0
          %s171 = sadd.s32 %s170, %s168
          %s172 = smul.addr %s171, 8
          %s173 = scalar_lea.vmem %s1, %s172
        $region28: #{tpu_custom_call.1} parent=23 // pred_fallthru
          _
      $region24: #{tpu_custom_call.1} parent=5 // pred_fallthru
        _
      %p174 = scmp.le.s32.totalorder 1, %s20
      %p175 = scmp.lt.s32.totalorder %s20, 3
      %p176 = pnand %p174, %p175
      %p177 = pneg %p176
      // Predicated region
      $region29: #{tpu_custom_call.1} parent=5 // pred_check
        _
      $region30: #{tpu_custom_call.1} parent=5 // pred_check_branch
        %179 = sbr.rel (%p176) target = $region32
      $region31: #{tpu_custom_call.1} parent=5 // pred_region
        %s180 = ssub.s32 %s20, 1
        %p181 = scmp.lt.s32.totalorder %s30, 1
        %s182 = scalar_select %p181, %s30, 1
        %p183 = scmp.lt.s32.totalorder %s29, 0
        %s184 = scalar_select %p183, %s29, 0
        %s185 = sadd.s32 %s184, %s182
        %s186 = smul.addr %s185, 8
        %s187 = scalar_lea.vmem %s1, %s186
        %p188 = pneg %p60
        %p189 = pneg %p57
        %p190 = scmp.lt.s32.totalorder %s29, 0
        %s191 = scalar_select %p190, %s29, 0
        %s192 = smul.addr %s191, 8
        %s193 = scalar_lea.vmem %s3, %s192
        %p194 = pneg %p86
        %p195 = pneg %p83
        %p196 = pneg %p107
        %p197 = pneg %p104
        %p198 = pneg %p135
        %p199 = pneg %p132
        %s200 = sand.u32 %s122, 1
        %s201 = scalar_lea.sflag [#allocation7], %s200
        %s202 = sand.u32 %s122, 1
        %s203 = smul.addr %s202, 8
        %s204 = scalar_lea.vmem [#allocation6], %s203
        %p205 = scmp.lt.s32.totalorder %s30, 1
        %s206 = scalar_select %p205, %s30, 1
        %p207 = scmp.lt.s32.totalorder %s29, 0
        %s208 = scalar_select %p207, %s29, 0
        %s209 = sadd.s32 %s208, %s206
        %s210 = smul.addr %s209, 8
        %s211 = scalar_lea.vmem %s1, %s210
        %p212 = scmp.lt.s32.totalorder %s29, 0
        %s213 = scalar_select %p212, %s29, 0
        %s214 = smul.addr %s213, 8
        %s215 = scalar_lea.vmem %s3, %s214
        %s216 = smul.u32 %s30, 8
        %s217 = smul.u32 %s29, 8
        %s218 = sadd.s32 %s216, %s217
        %s219 = sld [smem:[#allocation5 + %s218]]
        %s220 = scalar_lea.vmem %s2, %s219
        %p222 = scmp.lt.u32.totalorder 1, 8
        %p223 = pneg %p222
        // Predicated region
        $region33: #{tpu_custom_call.1} parent=31 // pred_check
          _
        $region34: #{tpu_custom_call.1} parent=31 // pred_check_branch
          %225 = sbr.rel (%p222) target = $region36
        $region35: #{tpu_custom_call.1} parent=31 // pred_region
          %s240 = sand.u32 1, 7
          %p241 = scmp.eq.s32.totalorder %s240, 0
          %p242 = pneg %p241
          // Predicated region
          $region48: #{tpu_custom_call.1} parent=35 // pred_check
            _
          $region49: #{tpu_custom_call.1} parent=35 // pred_check_branch
            %244 = sbr.rel (%p241) target = $region51
          $region50: #{tpu_custom_call.1} parent=35 // pred_region
            %s245 = sand.u32 1, 7
            %s246 = ssub.s32 1, %s245
            %s247 = scalar_lea.vmem %s220, %s246
            %s248 = ssub.s32 1, %s245
            %s249 = scalar_lea.vmem [#allocation2], %s248
            %s250 = sshllo.u32 0, %s245
            loop: start=0, step=1, limit=1
            $region52: #{tpu_custom_call.1} parent=50 // loop_pre_header
              _
            $region53: #{tpu_custom_call.1} parent=50 // loop_header
              %s252 = sphi 0, %s256
              %p253 = scmp.ge.s32.totalorder %s252, 1
              %s257 = sphi %s247, %s247
              %s258 = sphi %s249, %s249
            $region54: #{tpu_custom_call.1} parent=50 // loop_header_branch
              %255 = sbr.rel (%p253) target = $region58
            $region55: #{tpu_custom_call.1} parent=50 // loop_body
              %v259 = vld [vmem:[%s257] sm:%s250]
              %260 = vst [vmem:[%s258] sm:%s250] %v259
            $region56: #{tpu_custom_call.1} parent=50 // loop_footer
              %s256 = sadd.s32 1, %s252
            $region57: #{tpu_custom_call.1} parent=50 // loop_footer_branch
              %251 = sbr.rel target = $region53
            $region58: #{tpu_custom_call.1} parent=50 // loop_exit
              _
          $region51: #{tpu_custom_call.1} parent=35 // pred_fallthru
            _
        $region36: #{tpu_custom_call.1} parent=31 // pred_fallthru
          _
        // Predicated region
        $region37: #{tpu_custom_call.1} parent=31 // pred_check
          %p226 = pneg %p222
        $region38: #{tpu_custom_call.1} parent=31 // pred_check_branch
          %228 = sbr.rel (%p226) target = $region40
        $region39: #{tpu_custom_call.1} parent=31 // pred_region
          %s229 = sshllo.u32 0, 1
          loop: start=0, step=1, limit=1
          $region41: #{tpu_custom_call.1} parent=39 // loop_pre_header
            _
          $region42: #{tpu_custom_call.1} parent=39 // loop_header
            %s231 = sphi 0, %s235
            %p232 = scmp.ge.s32.totalorder %s231, 1
            %s236 = sphi %s220, %s220
            %s237 = sphi [#allocation2], [#allocation2]
          $region43: #{tpu_custom_call.1} parent=39 // loop_header_branch
            %234 = sbr.rel (%p232) target = $region47
          $region44: #{tpu_custom_call.1} parent=39 // loop_body
            %v238 = vld [vmem:[%s236] sm:%s229]
            %239 = vst [vmem:[%s237] sm:%s229] %v238
          $region45: #{tpu_custom_call.1} parent=39 // loop_footer
            %s235 = sadd.s32 1, %s231
          $region46: #{tpu_custom_call.1} parent=39 // loop_footer_branch
            %230 = sbr.rel target = $region42
          $region47: #{tpu_custom_call.1} parent=39 // loop_exit
            _
        $region40: #{tpu_custom_call.1} parent=31 // pred_fallthru
          _
        // Predicated region
        $region59: #{tpu_custom_call.1} parent=31 // pred_check
          _
        $region60: #{tpu_custom_call.1} parent=31 // pred_check_branch
          %263 = sbr.rel (0) target = $region62
        $region61: #{tpu_custom_call.1} parent=31 // pred_region
          %264 = vsyncadd [#allocation3], 16
        $region62: #{tpu_custom_call.1} parent=31 // pred_fallthru
          _
        %s265 = sadd.s32 %s218, 1
        %s266 = sld [smem:[#allocation5 + %s265]]
        %s267 = scalar_lea.vmem %s2, %s266
        %s268 = scalar_lea.vmem [#allocation2], 1
        %s269 = scalar_lea.sflag [#allocation3], 1
        %p271 = scmp.lt.u32.totalorder 1, 8
        %p272 = pneg %p271
        // Predicated region
        $region63: #{tpu_custom_call.1} parent=31 // pred_check
          _
        $region64: #{tpu_custom_call.1} parent=31 // pred_check_branch
          %274 = sbr.rel (%p271) target = $region66
        $region65: #{tpu_custom_call.1} parent=31 // pred_region
          %s289 = sand.u32 1, 7
          %p290 = scmp.eq.s32.totalorder %s289, 0
          %p291 = pneg %p290
          // Predicated region
          $region78: #{tpu_custom_call.1} parent=65 // pred_check
            _
          $region79: #{tpu_custom_call.1} parent=65 // pred_check_branch
            %293 = sbr.rel (%p290) target = $region81
          $region80: #{tpu_custom_call.1} parent=65 // pred_region
            %s294 = sand.u32 1, 7
            %s295 = ssub.s32 1, %s294
            %s296 = scalar_lea.vmem %s267, %s295
            %s297 = ssub.s32 1, %s294
            %s298 = scalar_lea.vmem %s268, %s297 [#allocation2]
            %s299 = sshllo.u32 0, %s294
            loop: start=0, step=1, limit=1
            $region82: #{tpu_custom_call.1} parent=80 // loop_pre_header
              _
            $region83: #{tpu_custom_call.1} parent=80 // loop_header
              %s301 = sphi 0, %s305
              %p302 = scmp.ge.s32.totalorder %s301, 1
              %s306 = sphi %s296, %s296
              %s307 = sphi %s298, %s298
            $region84: #{tpu_custom_call.1} parent=80 // loop_header_branch
              %304 = sbr.rel (%p302) target = $region88
            $region85: #{tpu_custom_call.1} parent=80 // loop_body
              %v308 = vld [vmem:[%s306] sm:%s299]
              %309 = vst [vmem:[%s307] sm:%s299] %v308
            $region86: #{tpu_custom_call.1} parent=80 // loop_footer
              %s305 = sadd.s32 1, %s301
            $region87: #{tpu_custom_call.1} parent=80 // loop_footer_branch
              %300 = sbr.rel target = $region83
            $region88: #{tpu_custom_call.1} parent=80 // loop_exit
              _
          $region81: #{tpu_custom_call.1} parent=65 // pred_fallthru
            _
        $region66: #{tpu_custom_call.1} parent=31 // pred_fallthru
          _
        // Predicated region
        $region67: #{tpu_custom_call.1} parent=31 // pred_check
          %p275 = pneg %p271
        $region68: #{tpu_custom_call.1} parent=31 // pred_check_branch
          %277 = sbr.rel (%p275) target = $region70
        $region69: #{tpu_custom_call.1} parent=31 // pred_region
          %s278 = sshllo.u32 0, 1
          loop: start=0, step=1, limit=1
          $region71: #{tpu_custom_call.1} parent=69 // loop_pre_header
            _
          $region72: #{tpu_custom_call.1} parent=69 // loop_header
            %s280 = sphi 0, %s284
            %p281 = scmp.ge.s32.totalorder %s280, 1
            %s285 = sphi %s267, %s267
            %s286 = sphi %s268, %s268
          $region73: #{tpu_custom_call.1} parent=69 // loop_header_branch
            %283 = sbr.rel (%p281) target = $region77
          $region74: #{tpu_custom_call.1} parent=69 // loop_body
            %v287 = vld [vmem:[%s285] sm:%s278]
            %288 = vst [vmem:[%s286] sm:%s278] %v287
          $region75: #{tpu_custom_call.1} parent=69 // loop_footer
            %s284 = sadd.s32 1, %s280
          $region76: #{tpu_custom_call.1} parent=69 // loop_footer_branch
            %279 = sbr.rel target = $region72
          $region77: #{tpu_custom_call.1} parent=69 // loop_exit
            _
        $region70: #{tpu_custom_call.1} parent=31 // pred_fallthru
          _
        // Predicated region
        $region89: #{tpu_custom_call.1} parent=31 // pred_check
          _
        $region90: #{tpu_custom_call.1} parent=31 // pred_check_branch
          %312 = sbr.rel (0) target = $region92
        $region91: #{tpu_custom_call.1} parent=31 // pred_region
          %313 = vsyncadd %s269, 16
        $region92: #{tpu_custom_call.1} parent=31 // pred_fallthru
          _
        %s314 = sadd.s32 %s218, 2
        %s315 = sld [smem:[#allocation5 + %s314]]
        %s316 = scalar_lea.vmem %s2, %s315
        %s317 = scalar_lea.vmem [#allocation2], 2
        %s318 = scalar_lea.sflag [#allocation3], 2
        %p320 = scmp.lt.u32.totalorder 1, 8
        %p321 = pneg %p320
        // Predicated region
        $region93: #{tpu_custom_call.1} parent=31 // pred_check
          _
        $region94: #{tpu_custom_call.1} parent=31 // pred_check_branch
          %323 = sbr.rel (%p320) target = $region96
        $region95: #{tpu_custom_call.1} parent=31 // pred_region
          %s338 = sand.u32 1, 7
          %p339 = scmp.eq.s32.totalorder %s338, 0
          %p340 = pneg %p339
          // Predicated region
          $region108: #{tpu_custom_call.1} parent=95 // pred_check
            _
          $region109: #{tpu_custom_call.1} parent=95 // pred_check_branch
            %342 = sbr.rel (%p339) target = $region111
          $region110: #{tpu_custom_call.1} parent=95 // pred_region
            %s343 = sand.u32 1, 7
            %s344 = ssub.s32 1, %s343
            %s345 = scalar_lea.vmem %s316, %s344
            %s346 = ssub.s32 1, %s343
            %s347 = scalar_lea.vmem %s317, %s346 [#allocation2]
            %s348 = sshllo.u32 0, %s343
            loop: start=0, step=1, limit=1
            $region112: #{tpu_custom_call.1} parent=110 // loop_pre_header
              _
            $region113: #{tpu_custom_call.1} parent=110 // loop_header
              %s350 = sphi 0, %s354
              %p351 = scmp.ge.s32.totalorder %s350, 1
              %s355 = sphi %s345, %s345
              %s356 = sphi %s347, %s347
            $region114: #{tpu_custom_call.1} parent=110 // loop_header_branch
              %353 = sbr.rel (%p351) target = $region118
            $region115: #{tpu_custom_call.1} parent=110 // loop_body
              %v357 = vld [vmem:[%s355] sm:%s348]
              %358 = vst [vmem:[%s356] sm:%s348] %v357
            $region116: #{tpu_custom_call.1} parent=110 // loop_footer
              %s354 = sadd.s32 1, %s350
            $region117: #{tpu_custom_call.1} parent=110 // loop_footer_branch
              %349 = sbr.rel target = $region113
            $region118: #{tpu_custom_call.1} parent=110 // loop_exit
              _
          $region111: #{tpu_custom_call.1} parent=95 // pred_fallthru
            _
        $region96: #{tpu_custom_call.1} parent=31 // pred_fallthru
          _
        // Predicated region
        $region97: #{tpu_custom_call.1} parent=31 // pred_check
          %p324 = pneg %p320
        $region98: #{tpu_custom_call.1} parent=31 // pred_check_branch
          %326 = sbr.rel (%p324) target = $region100
        $region99: #{tpu_custom_call.1} parent=31 // pred_region
          %s327 = sshllo.u32 0, 1
          loop: start=0, step=1, limit=1
          $region101: #{tpu_custom_call.1} parent=99 // loop_pre_header
            _
          $region102: #{tpu_custom_call.1} parent=99 // loop_header
            %s329 = sphi 0, %s333
            %p330 = scmp.ge.s32.totalorder %s329, 1
            %s334 = sphi %s316, %s316
            %s335 = sphi %s317, %s317
          $region103: #{tpu_custom_call.1} parent=99 // loop_header_branch
            %332 = sbr.rel (%p330) target = $region107
          $region104: #{tpu_custom_call.1} parent=99 // loop_body
            %v336 = vld [vmem:[%s334] sm:%s327]
            %337 = vst [vmem:[%s335] sm:%s327] %v336
          $region105: #{tpu_custom_call.1} parent=99 // loop_footer
            %s333 = sadd.s32 1, %s329
          $region106: #{tpu_custom_call.1} parent=99 // loop_footer_branch
            %328 = sbr.rel target = $region102
          $region107: #{tpu_custom_call.1} parent=99 // loop_exit
            _
        $region100: #{tpu_custom_call.1} parent=31 // pred_fallthru
          _
        // Predicated region
        $region119: #{tpu_custom_call.1} parent=31 // pred_check
          _
        $region120: #{tpu_custom_call.1} parent=31 // pred_check_branch
          %361 = sbr.rel (0) target = $region122
        $region121: #{tpu_custom_call.1} parent=31 // pred_region
          %362 = vsyncadd %s318, 16
        $region122: #{tpu_custom_call.1} parent=31 // pred_fallthru
          _
        %s363 = sadd.s32 %s218, 3
        %s364 = sld [smem:[#allocation5 + %s363]]
        %s365 = scalar_lea.vmem %s2, %s364
        %s366 = scalar_lea.vmem [#allocation2], 3
        %s367 = scalar_lea.sflag [#allocation3], 3
        %p369 = scmp.lt.u32.totalorder 1, 8
        %p370 = pneg %p369
        // Predicated region
        $region123: #{tpu_custom_call.1} parent=31 // pred_check
          _
        $region124: #{tpu_custom_call.1} parent=31 // pred_check_branch
          %372 = sbr.rel (%p369) target = $region126
        $region125: #{tpu_custom_call.1} parent=31 // pred_region
          %s387 = sand.u32 1, 7
          %p388 = scmp.eq.s32.totalorder %s387, 0
          %p389 = pneg %p388
          // Predicated region
          $region138: #{tpu_custom_call.1} parent=125 // pred_check
            _
          $region139: #{tpu_custom_call.1} parent=125 // pred_check_branch
            %391 = sbr.rel (%p388) target = $region141
          $region140: #{tpu_custom_call.1} parent=125 // pred_region
            %s392 = sand.u32 1, 7
            %s393 = ssub.s32 1, %s392
            %s394 = scalar_lea.vmem %s365, %s393
            %s395 = ssub.s32 1, %s392
            %s396 = scalar_lea.vmem %s366, %s395 [#allocation2]
            %s397 = sshllo.u32 0, %s392
            loop: start=0, step=1, limit=1
            $region142: #{tpu_custom_call.1} parent=140 // loop_pre_header
              _
            $region143: #{tpu_custom_call.1} parent=140 // loop_header
              %s399 = sphi 0, %s403
              %p400 = scmp.ge.s32.totalorder %s399, 1
              %s404 = sphi %s394, %s394
              %s405 = sphi %s396, %s396
            $region144: #{tpu_custom_call.1} parent=140 // loop_header_branch
              %402 = sbr.rel (%p400) target = $region148
            $region145: #{tpu_custom_call.1} parent=140 // loop_body
              %v406 = vld [vmem:[%s404] sm:%s397]
              %407 = vst [vmem:[%s405] sm:%s397] %v406
            $region146: #{tpu_custom_call.1} parent=140 // loop_footer
              %s403 = sadd.s32 1, %s399
            $region147: #{tpu_custom_call.1} parent=140 // loop_footer_branch
              %398 = sbr.rel target = $region143
            $region148: #{tpu_custom_call.1} parent=140 // loop_exit
              _
          $region141: #{tpu_custom_call.1} parent=125 // pred_fallthru
            _
        $region126: #{tpu_custom_call.1} parent=31 // pred_fallthru
          _
        // Predicated region
        $region127: #{tpu_custom_call.1} parent=31 // pred_check
          %p373 = pneg %p369
        $region128: #{tpu_custom_call.1} parent=31 // pred_check_branch
          %375 = sbr.rel (%p373) target = $region130
        $region129: #{tpu_custom_call.1} parent=31 // pred_region
          %s376 = sshllo.u32 0, 1
          loop: start=0, step=1, limit=1
          $region131: #{tpu_custom_call.1} parent=129 // loop_pre_header
            _
          $region132: #{tpu_custom_call.1} parent=129 // loop_header
            %s378 = sphi 0, %s382
            %p379 = scmp.ge.s32.totalorder %s378, 1
            %s383 = sphi %s365, %s365
            %s384 = sphi %s366, %s366
          $region133: #{tpu_custom_call.1} parent=129 // loop_header_branch
            %381 = sbr.rel (%p379) target = $region137
          $region134: #{tpu_custom_call.1} parent=129 // loop_body
            %v385 = vld [vmem:[%s383] sm:%s376]
            %386 = vst [vmem:[%s384] sm:%s376] %v385
          $region135: #{tpu_custom_call.1} parent=129 // loop_footer
            %s382 = sadd.s32 1, %s378
          $region136: #{tpu_custom_call.1} parent=129 // loop_footer_branch
            %377 = sbr.rel target = $region132
          $region137: #{tpu_custom_call.1} parent=129 // loop_exit
            _
        $region130: #{tpu_custom_call.1} parent=31 // pred_fallthru
          _
        // Predicated region
        $region149: #{tpu_custom_call.1} parent=31 // pred_check
          _
        $region150: #{tpu_custom_call.1} parent=31 // pred_check_branch
          %410 = sbr.rel (0) target = $region152
        $region151: #{tpu_custom_call.1} parent=31 // pred_region
          %411 = vsyncadd %s367, 16
        $region152: #{tpu_custom_call.1} parent=31 // pred_fallthru
          _
        %s412 = sadd.s32 %s218, 4
        %s413 = sld [smem:[#allocation5 + %s412]]
        %s414 = scalar_lea.vmem %s2, %s413
        %s415 = scalar_lea.vmem [#allocation2], 4
        %s416 = scalar_lea.sflag [#allocation3], 4
        %p418 = scmp.lt.u32.totalorder 1, 8
        %p419 = pneg %p418
        // Predicated region
        $region153: #{tpu_custom_call.1} parent=31 // pred_check
          _
        $region154: #{tpu_custom_call.1} parent=31 // pred_check_branch
          %421 = sbr.rel (%p418) target = $region156
        $region155: #{tpu_custom_call.1} parent=31 // pred_region
          %s436 = sand.u32 1, 7
          %p437 = scmp.eq.s32.totalorder %s436, 0
          %p438 = pneg %p437
          // Predicated region
          $region168: #{tpu_custom_call.1} parent=155 // pred_check
            _
          $region169: #{tpu_custom_call.1} parent=155 // pred_check_branch
            %440 = sbr.rel (%p437) target = $region171
          $region170: #{tpu_custom_call.1} parent=155 // pred_region
            %s441 = sand.u32 1, 7
            %s442 = ssub.s32 1, %s441
            %s443 = scalar_lea.vmem %s414, %s442
            %s444 = ssub.s32 1, %s441
            %s445 = scalar_lea.vmem %s415, %s444 [#allocation2]
            %s446 = sshllo.u32 0, %s441
            loop: start=0, step=1, limit=1
            $region172: #{tpu_custom_call.1} parent=170 // loop_pre_header
              _
            $region173: #{tpu_custom_call.1} parent=170 // loop_header
              %s448 = sphi 0, %s452
              %p449 = scmp.ge.s32.totalorder %s448, 1
              %s453 = sphi %s443, %s443
              %s454 = sphi %s445, %s445
            $region174: #{tpu_custom_call.1} parent=170 // loop_header_branch
              %451 = sbr.rel (%p449) target = $region178
            $region175: #{tpu_custom_call.1} parent=170 // loop_body
              %v455 = vld [vmem:[%s453] sm:%s446]
              %456 = vst [vmem:[%s454] sm:%s446] %v455
            $region176: #{tpu_custom_call.1} parent=170 // loop_footer
              %s452 = sadd.s32 1, %s448
            $region177: #{tpu_custom_call.1} parent=170 // loop_footer_branch
              %447 = sbr.rel target = $region173
            $region178: #{tpu_custom_call.1} parent=170 // loop_exit
              _
          $region171: #{tpu_custom_call.1} parent=155 // pred_fallthru
            _
        $region156: #{tpu_custom_call.1} parent=31 // pred_fallthru
          _
        // Predicated region
        $region157: #{tpu_custom_call.1} parent=31 // pred_check
          %p422 = pneg %p418
        $region158: #{tpu_custom_call.1} parent=31 // pred_check_branch
          %424 = sbr.rel (%p422) target = $region160
        $region159: #{tpu_custom_call.1} parent=31 // pred_region
          %s425 = sshllo.u32 0, 1
          loop: start=0, step=1, limit=1
          $region161: #{tpu_custom_call.1} parent=159 // loop_pre_header
            _
          $region162: #{tpu_custom_call.1} parent=159 // loop_header
            %s427 = sphi 0, %s431
            %p428 = scmp.ge.s32.totalorder %s427, 1
            %s432 = sphi %s414, %s414
            %s433 = sphi %s415, %s415
          $region163: #{tpu_custom_call.1} parent=159 // loop_header_branch
            %430 = sbr.rel (%p428) target = $region167
          $region164: #{tpu_custom_call.1} parent=159 // loop_body
            %v434 = vld [vmem:[%s432] sm:%s425]
            %435 = vst [vmem:[%s433] sm:%s425] %v434
          $region165: #{tpu_custom_call.1} parent=159 // loop_footer
            %s431 = sadd.s32 1, %s427
          $region166: #{tpu_custom_call.1} parent=159 // loop_footer_branch
            %426 = sbr.rel target = $region162
          $region167: #{tpu_custom_call.1} parent=159 // loop_exit
            _
        $region160: #{tpu_custom_call.1} parent=31 // pred_fallthru
          _
        // Predicated region
        $region179: #{tpu_custom_call.1} parent=31 // pred_check
          _
        $region180: #{tpu_custom_call.1} parent=31 // pred_check_branch
          %459 = sbr.rel (0) target = $region182
        $region181: #{tpu_custom_call.1} parent=31 // pred_region
          %460 = vsyncadd %s416, 16
        $region182: #{tpu_custom_call.1} parent=31 // pred_fallthru
          _
        %s461 = sadd.s32 %s218, 5
        %s462 = sld [smem:[#allocation5 + %s461]]
        %s463 = scalar_lea.vmem %s2, %s462
        %s464 = scalar_lea.vmem [#allocation2], 5
        %s465 = scalar_lea.sflag [#allocation3], 5
        %p467 = scmp.lt.u32.totalorder 1, 8
        %p468 = pneg %p467
        // Predicated region
        $region183: #{tpu_custom_call.1} parent=31 // pred_check
          _
        $region184: #{tpu_custom_call.1} parent=31 // pred_check_branch
          %470 = sbr.rel (%p467) target = $region186
        $region185: #{tpu_custom_call.1} parent=31 // pred_region
          %s485 = sand.u32 1, 7
          %p486 = scmp.eq.s32.totalorder %s485, 0
          %p487 = pneg %p486
          // Predicated region
          $region198: #{tpu_custom_call.1} parent=185 // pred_check
            _
          $region199: #{tpu_custom_call.1} parent=185 // pred_check_branch
            %489 = sbr.rel (%p486) target = $region201
          $region200: #{tpu_custom_call.1} parent=185 // pred_region
            %s490 = sand.u32 1, 7
            %s491 = ssub.s32 1, %s490
            %s492 = scalar_lea.vmem %s463, %s491
            %s493 = ssub.s32 1, %s490
            %s494 = scalar_lea.vmem %s464, %s493 [#allocation2]
            %s495 = sshllo.u32 0, %s490
            loop: start=0, step=1, limit=1
            $region202: #{tpu_custom_call.1} parent=200 // loop_pre_header
              _
            $region203: #{tpu_custom_call.1} parent=200 // loop_header
              %s497 = sphi 0, %s501
              %p498 = scmp.ge.s32.totalorder %s497, 1
              %s502 = sphi %s492, %s492
              %s503 = sphi %s494, %s494
            $region204: #{tpu_custom_call.1} parent=200 // loop_header_branch
              %500 = sbr.rel (%p498) target = $region208
            $region205: #{tpu_custom_call.1} parent=200 // loop_body
              %v504 = vld [vmem:[%s502] sm:%s495]
              %505 = vst [vmem:[%s503] sm:%s495] %v504
            $region206: #{tpu_custom_call.1} parent=200 // loop_footer
              %s501 = sadd.s32 1, %s497
            $region207: #{tpu_custom_call.1} parent=200 // loop_footer_branch
              %496 = sbr.rel target = $region203
            $region208: #{tpu_custom_call.1} parent=200 // loop_exit
              _
          $region201: #{tpu_custom_call.1} parent=185 // pred_fallthru
            _
        $region186: #{tpu_custom_call.1} parent=31 // pred_fallthru
          _
        // Predicated region
        $region187: #{tpu_custom_call.1} parent=31 // pred_check
          %p471 = pneg %p467
        $region188: #{tpu_custom_call.1} parent=31 // pred_check_branch
          %473 = sbr.rel (%p471) target = $region190
        $region189: #{tpu_custom_call.1} parent=31 // pred_region
          %s474 = sshllo.u32 0, 1
          loop: start=0, step=1, limit=1
          $region191: #{tpu_custom_call.1} parent=189 // loop_pre_header
            _
          $region192: #{tpu_custom_call.1} parent=189 // loop_header
            %s476 = sphi 0, %s480
            %p477 = scmp.ge.s32.totalorder %s476, 1
            %s481 = sphi %s463, %s463
            %s482 = sphi %s464, %s464
          $region193: #{tpu_custom_call.1} parent=189 // loop_header_branch
            %479 = sbr.rel (%p477) target = $region197
          $region194: #{tpu_custom_call.1} parent=189 // loop_body
            %v483 = vld [vmem:[%s481] sm:%s474]
            %484 = vst [vmem:[%s482] sm:%s474] %v483
          $region195: #{tpu_custom_call.1} parent=189 // loop_footer
            %s480 = sadd.s32 1, %s476
          $region196: #{tpu_custom_call.1} parent=189 // loop_footer_branch
            %475 = sbr.rel target = $region192
          $region197: #{tpu_custom_call.1} parent=189 // loop_exit
            _
        $region190: #{tpu_custom_call.1} parent=31 // pred_fallthru
          _
        // Predicated region
        $region209: #{tpu_custom_call.1} parent=31 // pred_check
          _
        $region210: #{tpu_custom_call.1} parent=31 // pred_check_branch
          %508 = sbr.rel (0) target = $region212
        $region211: #{tpu_custom_call.1} parent=31 // pred_region
          %509 = vsyncadd %s465, 16
        $region212: #{tpu_custom_call.1} parent=31 // pred_fallthru
          _
        %s510 = sadd.s32 %s218, 6
        %s511 = sld [smem:[#allocation5 + %s510]]
        %s512 = scalar_lea.vmem %s2, %s511
        %s513 = scalar_lea.vmem [#allocation2], 6
        %s514 = scalar_lea.sflag [#allocation3], 6
        %p516 = scmp.lt.u32.totalorder 1, 8
        %p517 = pneg %p516
        // Predicated region
        $region213: #{tpu_custom_call.1} parent=31 // pred_check
          _
        $region214: #{tpu_custom_call.1} parent=31 // pred_check_branch
          %519 = sbr.rel (%p516) target = $region216
        $region215: #{tpu_custom_call.1} parent=31 // pred_region
          %s534 = sand.u32 1, 7
          %p535 = scmp.eq.s32.totalorder %s534, 0
          %p536 = pneg %p535
          // Predicated region
          $region228: #{tpu_custom_call.1} parent=215 // pred_check
            _
          $region229: #{tpu_custom_call.1} parent=215 // pred_check_branch
            %538 = sbr.rel (%p535) target = $region231
          $region230: #{tpu_custom_call.1} parent=215 // pred_region
            %s539 = sand.u32 1, 7
            %s540 = ssub.s32 1, %s539
            %s541 = scalar_lea.vmem %s512, %s540
            %s542 = ssub.s32 1, %s539
            %s543 = scalar_lea.vmem %s513, %s542 [#allocation2]
            %s544 = sshllo.u32 0, %s539
            loop: start=0, step=1, limit=1
            $region232: #{tpu_custom_call.1} parent=230 // loop_pre_header
              _
            $region233: #{tpu_custom_call.1} parent=230 // loop_header
              %s546 = sphi 0, %s550
              %p547 = scmp.ge.s32.totalorder %s546, 1
              %s551 = sphi %s541, %s541
              %s552 = sphi %s543, %s543
            $region234: #{tpu_custom_call.1} parent=230 // loop_header_branch
              %549 = sbr.rel (%p547) target = $region238
            $region235: #{tpu_custom_call.1} parent=230 // loop_body
              %v553 = vld [vmem:[%s551] sm:%s544]
              %554 = vst [vmem:[%s552] sm:%s544] %v553
            $region236: #{tpu_custom_call.1} parent=230 // loop_footer
              %s550 = sadd.s32 1, %s546
            $region237: #{tpu_custom_call.1} parent=230 // loop_footer_branch
              %545 = sbr.rel target = $region233
            $region238: #{tpu_custom_call.1} parent=230 // loop_exit
              _
          $region231: #{tpu_custom_call.1} parent=215 // pred_fallthru
            _
        $region216: #{tpu_custom_call.1} parent=31 // pred_fallthru
          _
        // Predicated region
        $region217: #{tpu_custom_call.1} parent=31 // pred_check
          %p520 = pneg %p516
        $region218: #{tpu_custom_call.1} parent=31 // pred_check_branch
          %522 = sbr.rel (%p520) target = $region220
        $region219: #{tpu_custom_call.1} parent=31 // pred_region
          %s523 = sshllo.u32 0, 1
          loop: start=0, step=1, limit=1
          $region221: #{tpu_custom_call.1} parent=219 // loop_pre_header
            _
          $region222: #{tpu_custom_call.1} parent=219 // loop_header
            %s525 = sphi 0, %s529
            %p526 = scmp.ge.s32.totalorder %s525, 1
            %s530 = sphi %s512, %s512
            %s531 = sphi %s513, %s513
          $region223: #{tpu_custom_call.1} parent=219 // loop_header_branch
            %528 = sbr.rel (%p526) target = $region227
          $region224: #{tpu_custom_call.1} parent=219 // loop_body
            %v532 = vld [vmem:[%s530] sm:%s523]
            %533 = vst [vmem:[%s531] sm:%s523] %v532
          $region225: #{tpu_custom_call.1} parent=219 // loop_footer
            %s529 = sadd.s32 1, %s525
          $region226: #{tpu_custom_call.1} parent=219 // loop_footer_branch
            %524 = sbr.rel target = $region222
          $region227: #{tpu_custom_call.1} parent=219 // loop_exit
            _
        $region220: #{tpu_custom_call.1} parent=31 // pred_fallthru
          _
        // Predicated region
        $region239: #{tpu_custom_call.1} parent=31 // pred_check
          _
        $region240: #{tpu_custom_call.1} parent=31 // pred_check_branch
          %557 = sbr.rel (0) target = $region242
        $region241: #{tpu_custom_call.1} parent=31 // pred_region
          %558 = vsyncadd %s514, 16
        $region242: #{tpu_custom_call.1} parent=31 // pred_fallthru
          _
        %s559 = sadd.s32 %s218, 7
        %s560 = sld [smem:[#allocation5 + %s559]]
        %s561 = scalar_lea.vmem %s2, %s560
        %s562 = scalar_lea.vmem [#allocation2], 7
        %s563 = scalar_lea.sflag [#allocation3], 7
        %p565 = scmp.lt.u32.totalorder 1, 8
        %p566 = pneg %p565
        // Predicated region
        $region243: #{tpu_custom_call.1} parent=31 // pred_check
          _
        $region244: #{tpu_custom_call.1} parent=31 // pred_check_branch
          %568 = sbr.rel (%p565) target = $region246
        $region245: #{tpu_custom_call.1} parent=31 // pred_region
          %s583 = sand.u32 1, 7
          %p584 = scmp.eq.s32.totalorder %s583, 0
          %p585 = pneg %p584
          // Predicated region
          $region258: #{tpu_custom_call.1} parent=245 // pred_check
            _
          $region259: #{tpu_custom_call.1} parent=245 // pred_check_branch
            %587 = sbr.rel (%p584) target = $region261
          $region260: #{tpu_custom_call.1} parent=245 // pred_region
            %s588 = sand.u32 1, 7
            %s589 = ssub.s32 1, %s588
            %s590 = scalar_lea.vmem %s561, %s589
            %s591 = ssub.s32 1, %s588
            %s592 = scalar_lea.vmem %s562, %s591 [#allocation2]
            %s593 = sshllo.u32 0, %s588
            loop: start=0, step=1, limit=1
            $region262: #{tpu_custom_call.1} parent=260 // loop_pre_header
              _
            $region263: #{tpu_custom_call.1} parent=260 // loop_header
              %s595 = sphi 0, %s599
              %p596 = scmp.ge.s32.totalorder %s595, 1
              %s600 = sphi %s590, %s590
              %s601 = sphi %s592, %s592
            $region264: #{tpu_custom_call.1} parent=260 // loop_header_branch
              %598 = sbr.rel (%p596) target = $region268
            $region265: #{tpu_custom_call.1} parent=260 // loop_body
              %v602 = vld [vmem:[%s600] sm:%s593]
              %603 = vst [vmem:[%s601] sm:%s593] %v602
            $region266: #{tpu_custom_call.1} parent=260 // loop_footer
              %s599 = sadd.s32 1, %s595
            $region267: #{tpu_custom_call.1} parent=260 // loop_footer_branch
              %594 = sbr.rel target = $region263
            $region268: #{tpu_custom_call.1} parent=260 // loop_exit
              _
          $region261: #{tpu_custom_call.1} parent=245 // pred_fallthru
            _
        $region246: #{tpu_custom_call.1} parent=31 // pred_fallthru
          _
        // Predicated region
        $region247: #{tpu_custom_call.1} parent=31 // pred_check
          %p569 = pneg %p565
        $region248: #{tpu_custom_call.1} parent=31 // pred_check_branch
          %571 = sbr.rel (%p569) target = $region250
        $region249: #{tpu_custom_call.1} parent=31 // pred_region
          %s572 = sshllo.u32 0, 1
          loop: start=0, step=1, limit=1
          $region251: #{tpu_custom_call.1} parent=249 // loop_pre_header
            _
          $region252: #{tpu_custom_call.1} parent=249 // loop_header
            %s574 = sphi 0, %s578
            %p575 = scmp.ge.s32.totalorder %s574, 1
            %s579 = sphi %s561, %s561
            %s580 = sphi %s562, %s562
          $region253: #{tpu_custom_call.1} parent=249 // loop_header_branch
            %577 = sbr.rel (%p575) target = $region257
          $region254: #{tpu_custom_call.1} parent=249 // loop_body
            %v581 = vld [vmem:[%s579] sm:%s572]
            %582 = vst [vmem:[%s580] sm:%s572] %v581
          $region255: #{tpu_custom_call.1} parent=249 // loop_footer
            %s578 = sadd.s32 1, %s574
          $region256: #{tpu_custom_call.1} parent=249 // loop_footer_branch
            %573 = sbr.rel target = $region252
          $region257: #{tpu_custom_call.1} parent=249 // loop_exit
            _
        $region250: #{tpu_custom_call.1} parent=31 // pred_fallthru
          _
        // Predicated region
        $region269: #{tpu_custom_call.1} parent=31 // pred_check
          _
        $region270: #{tpu_custom_call.1} parent=31 // pred_check_branch
          %606 = sbr.rel (0) target = $region272
        $region271: #{tpu_custom_call.1} parent=31 // pred_region
          %607 = vsyncadd %s563, 16
        $region272: #{tpu_custom_call.1} parent=31 // pred_fallthru
          _
        %v608 = vld [vmem:[%s211] sm:$0xff]
        %vm609 = vcmp.eq.s32.totalorder %v608, 0
        %v610 = vld [vmem:[%s4] sm:$0x1]
        %vm611 = vcmp.eq.s32.totalorder %v608, 1
        %v612 = vld [vmem:[%s4 + $0x1] sm:$0x1]
        %v613 = vld [vmem:[%s4 + $0x2] sm:$0x1]
        %v614 = vsel %vm611, 1, 0
        %615 = vset.pattern.permute.xlu0 0
        %616 = vperm.xlu0 %615, %v614
        %v617 = vpop.permute.xlu0 %616
        %vm618 = vcmp.eq.s32.totalorder %v617, 1
        %v619 = vlaneseq
        %v620 = vshrl.u32 %v619, 7
        %v621 = vsub.s32 0, %v620
        %v622 = vrot.slane %v612, %v621
        %v623 = vlaneseq
        %v624 = vshrl.u32 %v623, 7
        %v625 = vsub.s32 0, %v624
        %v626 = vrot.slane %v613, %v625
        %v627 = vsel %vm618, %v622, %v626
        %v628 = vsel %vm609, 1, 0
        %629 = vset.pattern.permute.xlu0 0
        %630 = vperm.xlu0 %629, %v628
        %v631 = vpop.permute.xlu0 %630
        %vm632 = vcmp.eq.s32.totalorder %v631, 1
        %v633 = vlaneseq
        %v634 = vshrl.u32 %v633, 7
        %v635 = vsub.s32 0, %v634
        %v636 = vrot.slane %v610, %v635
        %v637 = vsel %vm632, %v636, %v627
        %s638 = smul.u32 1, 1
        %s639 = sshll.u32 %s638, 4
        %640 = dma.done [#allocation3], %s639
        %s641 = sshll.u32 %s638, 4
        %642 = dma.done %s269, %s641
        %s643 = sshll.u32 %s638, 4
        %644 = dma.done %s318, %s643
        %s645 = sshll.u32 %s638, 4
        %646 = dma.done %s367, %s645
        %s647 = sshll.u32 %s638, 4
        %648 = dma.done %s416, %s647
        %s649 = sshll.u32 %s638, 4
        %650 = dma.done %s465, %s649
        %s651 = sshll.u32 %s638, 4
        %652 = dma.done %s514, %s651
        %s653 = sshll.u32 %s638, 4
        %654 = dma.done %s563, %s653
        %v655 = vld [vmem:[#allocation2] sm:$0xff]
        %v656 = vld [vmem:[%s215] sm:$0xff]
        %v657 = vadd.f32 %v655, %v656
        %v658 = vadd.f32 %v657, %v637
        %vm659 = vcmask 261120
        %660 = vst.msk [vmem:[%s204] sm:$0xff] %vm659, %v658
        %s661 = sand.u32 %s122, 1
        %s662 = scalar_lea.sflag [#allocation7], %s661
        %s663 = sand.u32 %s122, 1
        %s664 = smul.addr %s663, 8
        %s665 = scalar_lea.vmem [#allocation6], %s664
        // Predicated region
        $region273: #{tpu_custom_call.1} parent=31 // pred_check
          %p666 = pneg %p132
        $region274: #{tpu_custom_call.1} parent=31 // pred_check_branch
          %668 = sbr.rel (%p666) target = $region276
        $region275: #{tpu_custom_call.1} parent=31 // pred_region
          %s670 = ssub.s32 128, 128
          %671 = vsyncadd %s662, %s670
          %s672 = sadd.s32 %s29, %s30
          %s673 = smul.addr %s672, 128
          %s674 = scalar_lea.hbm %s5, %s673
          %s676 = sshll.u32 %s665, 4
          %s677 = int_to_ptr.vmem [resolvable:$true] %s676
          %679 = dma.vmem_to_hbm [thread:$0]  %s677, 128, %s674, %s662
        $region276: #{tpu_custom_call.1} parent=31 // pred_fallthru
          _
      $region32: #{tpu_custom_call.1} parent=5 // pred_fallthru
        _
      %p680 = scmp.le.s32.totalorder 2, %s20
      // Predicated region
      $region277: #{tpu_custom_call.1} parent=5 // pred_check
        %p681 = pneg %p680
      $region278: #{tpu_custom_call.1} parent=5 // pred_check_branch
        %683 = sbr.rel (%p681) target = $region280
      $region279: #{tpu_custom_call.1} parent=5 // pred_region
        %s684 = ssub.s32 %s20, 2
        // Predicated region
        $region281: #{tpu_custom_call.1} parent=279 // pred_check
          %p685 = pneg %p138
        $region282: #{tpu_custom_call.1} parent=279 // pred_check_branch
          %687 = sbr.rel (%p685) target = $region284
        $region283: #{tpu_custom_call.1} parent=279 // pred_region
          %s688 = sand.u32 %s123, 1
          %s689 = scalar_lea.sflag [#allocation7], %s688
          %s690 = sand.u32 %s123, 1
          %s691 = smul.addr %s690, 8
          %s692 = scalar_lea.vmem [#allocation6], %s691
          %693 = dma.done %s689, 128
        $region284: #{tpu_custom_call.1} parent=279 // pred_fallthru
          _
      $region280: #{tpu_custom_call.1} parent=5 // pred_fallthru
        _
    $region6: #{tpu_custom_call.1} parent=1 // loop_footer
      %s24 = sadd.s32 1, %s20
    $region7: #{tpu_custom_call.1} parent=1 // loop_footer_branch
      %19 = sbr.rel target = $region3
    $region8: #{tpu_custom_call.1} parent=1 // loop_exit
      _
    %694 = vsyncpa [#allocation7], 1
    %s695 = scalar_lea.sflag [#allocation7], 1
    %696 = vsyncpa %s695, 1
  %697 = vsyncmov [#allocation3]
  %s698 = vpop.sfrf %697
  %p699 = scmp.eq.s32.totalorder %s698, 0
  %p700 = pneg %p699
  %702 = shalt.err (%p700)
  %s703 = scalar_lea.sflag [#allocation3], 1
  %704 = vsyncmov %s703
  %s705 = vpop.sfrf %704
  %p706 = scmp.eq.s32.totalorder %s705, 0
  %p707 = pneg %p706
  %709 = shalt.err (%p707)
  %s710 = scalar_lea.sflag [#allocation3], 2
  %711 = vsyncmov %s710
  %s712 = vpop.sfrf %711
  %p713 = scmp.eq.s32.totalorder %s712, 0
  %p714 = pneg %p713
  %716 = shalt.err (%p714)
  %s717 = scalar_lea.sflag [#allocation3], 3
  %718 = vsyncmov %s717
  %s719 = vpop.sfrf %718
  %p720 = scmp.eq.s32.totalorder %s719, 0
  %p721 = pneg %p720
  %723 = shalt.err (%p721)
  %s724 = scalar_lea.sflag [#allocation3], 4
  %725 = vsyncmov %s724
  %s726 = vpop.sfrf %725
  %p727 = scmp.eq.s32.totalorder %s726, 0
  %p728 = pneg %p727
  %730 = shalt.err (%p728)
  %s731 = scalar_lea.sflag [#allocation3], 5
  %732 = vsyncmov %s731
  %s733 = vpop.sfrf %732
  %p734 = scmp.eq.s32.totalorder %s733, 0
  %p735 = pneg %p734
  %737 = shalt.err (%p735)
  %s738 = scalar_lea.sflag [#allocation3], 6
  %739 = vsyncmov %s738
  %s740 = vpop.sfrf %739
  %p741 = scmp.eq.s32.totalorder %s740, 0
  %p742 = pneg %p741
  %744 = shalt.err (%p742)
  %s745 = scalar_lea.sflag [#allocation3], 7
  %746 = vsyncmov %s745
  %s747 = vpop.sfrf %746
  %p748 = scmp.eq.s32.totalorder %s747, 0
  %p749 = pneg %p748
  %751 = shalt.err (%p749)

</llo_original>
